<compile_context>
chip_gen: v5e
topology: v5e:2x2
jax: 0.10.0
libtpu: 0.0.40
codegen_flags: <defaults>
</compile_context>

<pallas_src>
import functools

import jax
import jax.numpy as jnp
from jax.experimental import pallas as pl
from jax.experimental.pallas import tpu as pltpu


# ----------------------------- Pallas kernel -------------------------------

def fused_cls_head_kernel(word_ref, seg_ref, pos_ref, g_ref, b_ref,
                          wp_ref, bp_ref, wd_ref, bd_ref, out_ref):
    """Fused: embed-sum -> LayerNorm -> pooler(Linear+tanh) -> dense(Linear).

    word/seg: [TB, H]   pos/g/b/bp: [1, H]   wp: [H, H] bf16
    wd: [H, Ppad] bf16  bd: [1, Ppad]        out: [TB, Ppad] f32 (lane-dense)
    """
    # --- embedding sum (fused; never materialized in HBM) ---
    x = (word_ref[...].astype(jnp.float32)
         + seg_ref[...].astype(jnp.float32)
         + pos_ref[...].astype(jnp.float32))                      # [TB, H]

    # --- LayerNorm (one-pass variance: E[x^2] - mean^2) ---
    mean = jnp.mean(x, axis=-1, keepdims=True)
    var = jnp.mean(x * x, axis=-1, keepdims=True) - mean * mean
    y = (x - mean) * jax.lax.rsqrt(var + 1e-12)
    h = y * g_ref[...].astype(jnp.float32) + b_ref[...].astype(jnp.float32)

    # --- pooler: tanh(h @ Wp + bp); bf16 MXU inputs, f32 accumulation ---
    pooled = jnp.tanh(
        jnp.dot(h.astype(jnp.bfloat16), wp_ref[...],
                preferred_element_type=jnp.float32)
        + bp_ref[...].astype(jnp.float32))

    # --- dropout (inference) == identity; dense head on padded lanes ---
    logits = (jnp.dot(pooled.astype(jnp.bfloat16), wd_ref[...],
                      preferred_element_type=jnp.float32)
              + bd_ref[...].astype(jnp.float32))

    out_ref[...] = logits.astype(out_ref.dtype)                   # [TB, Ppad]


# ------------------------------ JAX wrapper --------------------------------

def _choose_block_b(batch):
    """Row tile for the batch grid; whole batch when it is small/odd-sized."""
    for tb in (512, 256, 128, 64, 32, 16, 8):
        if batch >= tb and batch % tb == 0:
            return tb
    return batch


@functools.partial(jax.jit, static_argnames=("polarities_dim",))
def bert_spc_forward(params, text_bert_indices, bert_segments_ids, *,
                     polarities_dim):
    """Forward pass mirroring BERT_SPC.forward(inputs) -> logits [B, P]."""
    # ---- CLS-only embedding lookups (tiny [B]-sized gathers, wrapper-side) ----
    cls_ids = text_bert_indices[:, 0]                  # [B]
    cls_seg = bert_segments_ids[:, 0]                  # [B]
    word_cls = params["word_emb"][cls_ids]             # [B, H]
    seg_cls = params["seg_emb"][cls_seg]               # [B, H]
    pos_cls = params["pos_emb"][0:1, :]                # [1, H]

    b, h = word_cls.shape
    p = polarities_dim

    # ---- pad the head output to a lane-dense 128-wide slab ----
    p_pad = max(128, ((p + 127) // 128) * 128)
    wd_pad = jnp.zeros((h, p_pad), jnp.float32).at[:, :p].set(params["dense_w"])
    bd_pad = jnp.zeros((1, p_pad), jnp.float32).at[:, :p].set(params["dense_b"])

    # ---- bf16 weights at the kernel boundary (f32 accumulation in-kernel) ----
    wp_bf16 = params["pooler_w"].astype(jnp.bfloat16)
    wd_bf16 = wd_pad.astype(jnp.bfloat16)

    block_b = _choose_block_b(b)
    grid = (b // block_b,)

    const = lambda i: (0, 0)          # parameters: resident, not re-fetched
    rows = lambda i: (i, 0)           # batch-row tiles

    out_padded = pl.pallas_call(
        fused_cls_head_kernel,
        out_shape=jax.ShapeDtypeStruct((b, p_pad), jnp.float32),
        grid_spec=pltpu.PrefetchScalarGridSpec(
            num_scalar_prefetch=0,
            grid=grid,
            in_specs=[
                pl.BlockSpec((block_b, h), rows),     # word_cls
                pl.BlockSpec((block_b, h), rows),     # seg_cls
                pl.BlockSpec((1, h), const),          # pos_cls
                pl.BlockSpec((1, h), const),          # ln_gamma
                pl.BlockSpec((1, h), const),          # ln_beta
                pl.BlockSpec((h, h), const),          # pooler_w (bf16)
                pl.BlockSpec((1, h), const),          # pooler_b
                pl.BlockSpec((h, p_pad), const),      # dense_w padded (bf16)
                pl.BlockSpec((1, p_pad), const),      # dense_b padded
            ],
            out_specs=pl.BlockSpec((block_b, p_pad), rows),
        ),
        compiler_params=pltpu.CompilerParams(
            dimension_semantics=("parallel",),
        ),
    )(word_cls, seg_cls, pos_cls,
      params["ln_gamma"], params["ln_beta"],
      wp_bf16, params["pooler_b"],
      wd_bf16, bd_pad)

    return out_padded[:, :p]                           # cheap wrapper-side slice


# --------------------------- pure-JAX reference ----------------------------

def bert_spc_reference(params, text_bert_indices, bert_segments_ids, *,
                       polarities_dim):
    cls_ids = text_bert_indices[:, 0]
    cls_seg = bert_segments_ids[:, 0]
    x = (params["word_emb"][cls_ids]
         + params["seg_emb"][cls_seg]
         + params["pos_emb"][0:1, :]).astype(jnp.float32)
    mean = jnp.mean(x, axis=-1, keepdims=True)
    var = jnp.mean((x - mean) ** 2, axis=-1, keepdims=True)
    h = (x - mean) * jax.lax.rsqrt(var + 1e-12) * params["ln_gamma"] + params["ln_beta"]
    pooled = jnp.tanh(
        jnp.dot(h.astype(jnp.bfloat16), params["pooler_w"].astype(jnp.bfloat16),
                preferred_element_type=jnp.float32) + params["pooler_b"])
    logits = (jnp.dot(pooled.astype(jnp.bfloat16),
                      params["dense_w"].astype(jnp.bfloat16),
                      preferred_element_type=jnp.float32) + params["dense_b"])
    return logits[:, :polarities_dim]


# ------------------------------- main / demo -------------------------------

def make_params(key, vocab_size, type_vocab_size, max_pos, bert_dim,
                polarities_dim):
    ks = jax.random.split(key, 5)
    scale = 0.02
    return {
        "word_emb": scale * jax.random.normal(ks[0], (vocab_size, bert_dim), jnp.float32),
        "seg_emb": scale * jax.random.normal(ks[1], (type_vocab_size, bert_dim), jnp.float32),
        "pos_emb": scale * jax.random.normal(ks[2], (max_pos, bert_dim), jnp.float32),
        "ln_gamma": jnp.ones((1, bert_dim), jnp.float32),
        "ln_beta": jnp.zeros((1, bert_dim), jnp.float32),
        "pooler_w": scale * jax.random.normal(ks[3], (bert_dim, bert_dim), jnp.float32),
        "pooler_b": jnp.zeros((1, bert_dim), jnp.float32),
        "dense_w": scale * jax.random.normal(ks[4], (bert_dim, polarities_dim), jnp.float32),
        "dense_b": jnp.zeros((1, polarities_dim), jnp.float32),
    }


if __name__ == "__main__":
    B, S, H, P = 2, 8, 32, 3          # batch, seq, bert_dim, polarities_dim
    VOCAB, TYPES = 30, 2

    key = jax.random.PRNGKey(0)
    k_ids, k_seg, k_par = jax.random.split(key, 3)

    text_bert_indices = jax.random.randint(k_ids, (B, S), 0, VOCAB, dtype=jnp.int32)
    bert_segments_ids = jax.random.randint(k_seg, (B, S), 0, TYPES, dtype=jnp.int32)
    params = make_params(k_par, VOCAB, TYPES, S, H, P)

    logits = bert_spc_forward(params, text_bert_indices, bert_segments_ids,
                              polarities_dim=P)
    jax.block_until_ready(logits)

    assert logits.shape == (B, P) and logits.dtype == jnp.float32

    ref = bert_spc_reference(params, text_bert_indices, bert_segments_ids,
                             polarities_dim=P)
    assert jnp.allclose(logits, ref, rtol=1e-2, atol=1e-3), (
        f"max abs err = {jnp.max(jnp.abs(logits - ref))}")

    print("KERNEL_OK")
</pallas_src>

<mosaic_0001>
module attributes {stable_mosaic.version = 11 : i64} {
  func.func @fused_cls_head_kernel(%arg0: i32, %arg1: memref<2x32xf32, #tpu.memory_space<vmem>>, %arg2: memref<2x32xf32, #tpu.memory_space<vmem>>, %arg3: memref<1x32xf32, #tpu.memory_space<vmem>>, %arg4: memref<1x32xf32, #tpu.memory_space<vmem>>, %arg5: memref<1x32xf32, #tpu.memory_space<vmem>>, %arg6: memref<32x32xbf16, #tpu.memory_space<vmem>>, %arg7: memref<1x32xf32, #tpu.memory_space<vmem>>, %arg8: memref<32x128xbf16, #tpu.memory_space<vmem>>, %arg9: memref<1x128xf32, #tpu.memory_space<vmem>>, %arg10: memref<2x128xf32, #tpu.memory_space<vmem>>) attributes {dimension_semantics = [#tpu.dimension_semantics<parallel>], iteration_bounds = array<i64: 1>, scalar_prefetch = 0 : i64, scratch_operands = 0 : i64, tpu.core_type = #tpu.core_type<tc>, window_params = [{transform_indices = @transform_0, window_bounds = array<i64: 2, 32>}, {transform_indices = @transform_1, window_bounds = array<i64: 2, 32>}, {pipeline_mode = #tpu.pipeline_mode<synchronous>, transform_indices = @transform_2, window_bounds = array<i64: 1, 32>}, {pipeline_mode = #tpu.pipeline_mode<synchronous>, transform_indices = @transform_3, window_bounds = array<i64: 1, 32>}, {pipeline_mode = #tpu.pipeline_mode<synchronous>, transform_indices = @transform_4, window_bounds = array<i64: 1, 32>}, {pipeline_mode = #tpu.pipeline_mode<synchronous>, transform_indices = @transform_5, window_bounds = array<i64: 32, 32>}, {pipeline_mode = #tpu.pipeline_mode<synchronous>, transform_indices = @transform_6, window_bounds = array<i64: 1, 32>}, {pipeline_mode = #tpu.pipeline_mode<synchronous>, transform_indices = @transform_7, window_bounds = array<i64: 32, 128>}, {pipeline_mode = #tpu.pipeline_mode<synchronous>, transform_indices = @transform_8, window_bounds = array<i64: 1, 128>}, {transform_indices = @transform_9, window_bounds = array<i64: 2, 128>}]} {
    %c0 = arith.constant 0 : index
    %c0_0 = arith.constant 0 : index
    %0 = vector.load %arg1[%c0, %c0_0] : memref<2x32xf32, #tpu.memory_space<vmem>>, vector<2x32xf32>
    %c0_1 = arith.constant 0 : index
    %c0_2 = arith.constant 0 : index
    %1 = vector.load %arg2[%c0_1, %c0_2] : memref<2x32xf32, #tpu.memory_space<vmem>>, vector<2x32xf32>
    %2 = arith.addf %0, %1 : vector<2x32xf32>
    %c0_3 = arith.constant 0 : index
    %c0_4 = arith.constant 0 : index
    %3 = vector.load %arg3[%c0_3, %c0_4] : memref<1x32xf32, #tpu.memory_space<vmem>>, vector<1x32xf32>
    %4 = vector.broadcast %3 : vector<1x32xf32> to vector<2x32xf32>
    %5 = arith.addf %2, %4 : vector<2x32xf32>
    %cst = arith.constant dense<0.000000e+00> : vector<2xf32>
    %6 = vector.multi_reduction <add>, %5, %cst [1] : vector<2x32xf32> to vector<2xf32>
    %7 = vector.shape_cast %6 : vector<2xf32> to vector<2x1xf32>
    %cst_5 = arith.constant 3.200000e+01 : f32
    %8 = vector.broadcast %cst_5 : f32 to vector<2x1xf32>
    %9 = arith.divf %7, %8 : vector<2x1xf32>
    %10 = arith.mulf %5, %5 : vector<2x32xf32>
    %cst_6 = arith.constant dense<0.000000e+00> : vector<2xf32>
    %11 = vector.multi_reduction <add>, %10, %cst_6 [1] : vector<2x32xf32> to vector<2xf32>
    %12 = vector.shape_cast %11 : vector<2xf32> to vector<2x1xf32>
    %cst_7 = arith.constant 3.200000e+01 : f32
    %13 = vector.broadcast %cst_7 : f32 to vector<2x1xf32>
    %14 = arith.divf %12, %13 : vector<2x1xf32>
    %15 = arith.mulf %9, %9 : vector<2x1xf32>
    %16 = arith.subf %14, %15 : vector<2x1xf32>
    %17 = vector.broadcast %9 : vector<2x1xf32> to vector<2x32xf32>
    %18 = arith.subf %5, %17 : vector<2x32xf32>
    %cst_8 = arith.constant 9.99999996E-13 : f32
    %19 = vector.broadcast %cst_8 : f32 to vector<2x1xf32>
    %20 = arith.addf %16, %19 : vector<2x1xf32>
    %21 = math.rsqrt %20 : vector<2x1xf32>
    %22 = vector.broadcast %21 : vector<2x1xf32> to vector<2x32xf32>
    %23 = arith.mulf %18, %22 : vector<2x32xf32>
    %c0_9 = arith.constant 0 : index
    %c0_10 = arith.constant 0 : index
    %24 = vector.load %arg4[%c0_9, %c0_10] : memref<1x32xf32, #tpu.memory_space<vmem>>, vector<1x32xf32>
    %25 = vector.broadcast %24 : vector<1x32xf32> to vector<2x32xf32>
    %26 = arith.mulf %23, %25 : vector<2x32xf32>
    %c0_11 = arith.constant 0 : index
    %c0_12 = arith.constant 0 : index
    %27 = vector.load %arg5[%c0_11, %c0_12] : memref<1x32xf32, #tpu.memory_space<vmem>>, vector<1x32xf32>
    %28 = vector.broadcast %27 : vector<1x32xf32> to vector<2x32xf32>
    %29 = arith.addf %26, %28 : vector<2x32xf32>
    %30 = arith.truncf %29 : vector<2x32xf32> to vector<2x32xbf16>
    %c0_13 = arith.constant 0 : index
    %c0_14 = arith.constant 0 : index
    %31 = vector.load %arg6[%c0_13, %c0_14] : memref<32x32xbf16, #tpu.memory_space<vmem>>, vector<32x32xbf16>
    %cst_15 = arith.constant dense<0.000000e+00> : vector<2x32xf32>
    %32 = tpu.matmul %30, %31, %cst_15 {dimension_numbers = #tpu.dot_dimension_numbers<[1], [0], [0], [1], [0, 0, 1, 1], [], []>} : vector<2x32xbf16>, vector<32x32xbf16>, vector<2x32xf32> -> vector<2x32xf32>
    %c0_16 = arith.constant 0 : index
    %c0_17 = arith.constant 0 : index
    %33 = vector.load %arg7[%c0_16, %c0_17] : memref<1x32xf32, #tpu.memory_space<vmem>>, vector<1x32xf32>
    %34 = vector.broadcast %33 : vector<1x32xf32> to vector<2x32xf32>
    %35 = arith.addf %32, %34 : vector<2x32xf32>
    %36 = math.tanh %35 : vector<2x32xf32>
    %37 = arith.truncf %36 : vector<2x32xf32> to vector<2x32xbf16>
    %c0_18 = arith.constant 0 : index
    %c0_19 = arith.constant 0 : index
    %38 = vector.load %arg8[%c0_18, %c0_19] : memref<32x128xbf16, #tpu.memory_space<vmem>>, vector<32x128xbf16>
    %cst_20 = arith.constant dense<0.000000e+00> : vector<2x128xf32>
    %39 = tpu.matmul %37, %38, %cst_20 {dimension_numbers = #tpu.dot_dimension_numbers<[1], [0], [0], [1], [0, 0, 1, 1], [], []>} : vector<2x32xbf16>, vector<32x128xbf16>, vector<2x128xf32> -> vector<2x128xf32>
    %c0_21 = arith.constant 0 : index
    %c0_22 = arith.constant 0 : index
    %40 = vector.load %arg9[%c0_21, %c0_22] : memref<1x128xf32, #tpu.memory_space<vmem>>, vector<1x128xf32>
    %41 = vector.broadcast %40 : vector<1x128xf32> to vector<2x128xf32>
    %42 = arith.addf %39, %41 : vector<2x128xf32>
    %c0_23 = arith.constant 0 : index
    %c0_24 = arith.constant 0 : index
    %43 = vector.load %arg10[%c0_23, %c0_24] : memref<2x128xf32, #tpu.memory_space<vmem>>, vector<2x128xf32>
    tpu.vector_store %arg10[%c0_23, %c0_24], %42 {strides = array<i32>} : memref<2x128xf32, #tpu.memory_space<vmem>>, vector<2x128xf32>,
    return
  }
  func.func @transform_0(%arg0: i32) -> (i32, i32) {
    %c0_i32 = arith.constant 0 : i32
    %c0_i32_0 = arith.constant 0 : i32
    return %arg0, %c0_i32 : i32, i32
  }
  func.func @transform_1(%arg0: i32) -> (i32, i32) {
    %c0_i32 = arith.constant 0 : i32
    %c0_i32_0 = arith.constant 0 : i32
    return %arg0, %c0_i32 : i32, i32
  }
  func.func @transform_2(%arg0: i32) -> (i32, i32) {
    %c0_i32 = arith.constant 0 : i32
    %c0_i32_0 = arith.constant 0 : i32
    %c0_i32_1 = arith.constant 0 : i32
    return %c0_i32, %c0_i32_0 : i32, i32
  }
  func.func @transform_3(%arg0: i32) -> (i32, i32) {
    %c0_i32 = arith.constant 0 : i32
    %c0_i32_0 = arith.constant 0 : i32
    %c0_i32_1 = arith.constant 0 : i32
    return %c0_i32, %c0_i32_0 : i32, i32
  }
  func.func @transform_4(%arg0: i32) -> (i32, i32) {
    %c0_i32 = arith.constant 0 : i32
    %c0_i32_0 = arith.constant 0 : i32
    %c0_i32_1 = arith.constant 0 : i32
    return %c0_i32, %c0_i32_0 : i32, i32
  }
  func.func @transform_5(%arg0: i32) -> (i32, i32) {
    %c0_i32 = arith.constant 0 : i32
    %c0_i32_0 = arith.constant 0 : i32
    %c0_i32_1 = arith.constant 0 : i32
    return %c0_i32, %c0_i32_0 : i32, i32
  }
  func.func @transform_6(%arg0: i32) -> (i32, i32) {
    %c0_i32 = arith.constant 0 : i32
    %c0_i32_0 = arith.constant 0 : i32
    %c0_i32_1 = arith.constant 0 : i32
    return %c0_i32, %c0_i32_0 : i32, i32
  }
  func.func @transform_7(%arg0: i32) -> (i32, i32) {
    %c0_i32 = arith.constant 0 : i32
    %c0_i32_0 = arith.constant 0 : i32
    %c0_i32_1 = arith.constant 0 : i32
    return %c0_i32, %c0_i32_0 : i32, i32
  }
  func.func @transform_8(%arg0: i32) -> (i32, i32) {
    %c0_i32 = arith.constant 0 : i32
    %c0_i32_0 = arith.constant 0 : i32
    %c0_i32_1 = arith.constant 0 : i32
    return %c0_i32, %c0_i32_0 : i32, i32
  }
  func.func @transform_9(%arg0: i32) -> (i32, i32) {
    %c0_i32 = arith.constant 0 : i32
    %c0_i32_0 = arith.constant 0 : i32
    return %arg0, %c0_i32 : i32, i32
  }
}

</mosaic_0001>

<llo_original>
// kernel: bert_spc_forward.1
$region0: #{bert_spc_forward.1}
  #allocation0 [shape = 'u32[]', space=smem, size = 0x4, offset = 0x4, fixed_abs, tag = 'smem constant byte address 0x4 - core index']
  #allocation1 [shape = 'u32[72,128]{1,0:T(1,128)}', space=vmem, size = 0x9000, scoped, tag = 'internal scratch']
  %s0 = inlined_call_operand.vmem [shape: f32[2,32], index: 0, kind: input, shape index: {}]
  %s1 = inlined_call_operand.vmem [shape: f32[2,32], index: 1, kind: input, shape index: {}]
  %s2 = inlined_call_operand.vmem [shape: f32[1,32], index: 2, kind: input, shape index: {}]
  %s3 = inlined_call_operand.vmem [shape: f32[1,32], index: 3, kind: input, shape index: {}]
  %s4 = inlined_call_operand.vmem [shape: f32[1,32], index: 4, kind: input, shape index: {}]
  %s5 = inlined_call_operand.vmem [shape: bf16[32,32], index: 5, kind: input, shape index: {}]
  %s6 = inlined_call_operand.vmem [shape: f32[1,32], index: 6, kind: input, shape index: {}]
  %s7 = inlined_call_operand.vmem [shape: bf16[32,128], index: 7, kind: input, shape index: {}]
  %s8 = inlined_call_operand.vmem [shape: f32[1,128], index: 8, kind: input, shape index: {}]
  %s9 = inlined_call_operand.hbm [shape: f32[2,128], index: 9, kind: output, shape index: {}]
  %s10 = sld [smem:[#allocation0]]
  $region46: #{bert_spc_forward.1} parent=0
    _
  %s12 = ssub.s32 1, %s10
  %s13 = scalar_select 0, %s12, %s10
  $region1: #{bert_spc_forward.1} parent=0
    #allocation2 [shape = 'u8[1024]{0}', space=vmem, size = 0x400, scoped, tag = 'output window, operand 0, single buffered']
    #allocation3 [shape = 's32[1]{0}', space=sflag, size = 0x4, scoped, tag = 'scoped memory for bert_spc_forward.1']
    %14 = vsyncpa [#allocation3], 0
    // Predicated region
    $region2: #{bert_spc_forward.1} parent=1 // pred_check
      _
    $region3: #{bert_spc_forward.1} parent=1 // pred_check_branch
      %16 = sbr.rel (0) target = $region5
    $region4: #{bert_spc_forward.1} parent=1 // pred_region
      _
    $region5: #{bert_spc_forward.1} parent=1 // pred_fallthru
      _
    // Predicated region
    $region6: #{bert_spc_forward.1} parent=1 // pred_check
      _
    $region7: #{bert_spc_forward.1} parent=1 // pred_check_branch
      %18 = sbr.rel (0) target = $region9
    $region8: #{bert_spc_forward.1} parent=1 // pred_region
      _
    $region9: #{bert_spc_forward.1} parent=1 // pred_fallthru
      _
    // Predicated region
    $region10: #{bert_spc_forward.1} parent=1 // pred_check
      _
    $region11: #{bert_spc_forward.1} parent=1 // pred_check_branch
      %20 = sbr.rel (0) target = $region13
    $region12: #{bert_spc_forward.1} parent=1 // pred_region
      _
    $region13: #{bert_spc_forward.1} parent=1 // pred_fallthru
      _
    // Predicated region
    $region14: #{bert_spc_forward.1} parent=1 // pred_check
      _
    $region15: #{bert_spc_forward.1} parent=1 // pred_check_branch
      %22 = sbr.rel (0) target = $region17
    $region16: #{bert_spc_forward.1} parent=1 // pred_region
      _
    $region17: #{bert_spc_forward.1} parent=1 // pred_fallthru
      _
    // Predicated region
    $region18: #{bert_spc_forward.1} parent=1 // pred_check
      _
    $region19: #{bert_spc_forward.1} parent=1 // pred_check_branch
      %24 = sbr.rel (0) target = $region21
    $region20: #{bert_spc_forward.1} parent=1 // pred_region
      _
    $region21: #{bert_spc_forward.1} parent=1 // pred_fallthru
      _
    // Predicated region
    $region22: #{bert_spc_forward.1} parent=1 // pred_check
      _
    $region23: #{bert_spc_forward.1} parent=1 // pred_check_branch
      %26 = sbr.rel (0) target = $region25
    $region24: #{bert_spc_forward.1} parent=1 // pred_region
      _
    $region25: #{bert_spc_forward.1} parent=1 // pred_fallthru
      _
    // Predicated region
    $region26: #{bert_spc_forward.1} parent=1 // pred_check
      _
    $region27: #{bert_spc_forward.1} parent=1 // pred_check_branch
      %28 = sbr.rel (0) target = $region29
    $region28: #{bert_spc_forward.1} parent=1 // pred_region
      _
    $region29: #{bert_spc_forward.1} parent=1 // pred_fallthru
      _
    // Predicated region
    $region30: #{bert_spc_forward.1} parent=1 // pred_check
      _
    $region31: #{bert_spc_forward.1} parent=1 // pred_check_branch
      %30 = sbr.rel (0) target = $region33
    $region32: #{bert_spc_forward.1} parent=1 // pred_region
      _
    $region33: #{bert_spc_forward.1} parent=1 // pred_fallthru
      _
    // Predicated region
    $region34: #{bert_spc_forward.1} parent=1 // pred_check
      _
    $region35: #{bert_spc_forward.1} parent=1 // pred_check_branch
      %32 = sbr.rel (0) target = $region37
    $region36: #{bert_spc_forward.1} parent=1 // pred_region
      _
    $region37: #{bert_spc_forward.1} parent=1 // pred_fallthru
      _
    %v34 = vld [vmem:[%s0] sm:$0x3]
    %v35 = vld [vmem:[%s1] sm:$0x3]
    %v36 = vadd.f32 %v34, %v35
    %v37 = vld [vmem:[%s2] sm:$0x1]
    %v39 = vperm.slane %v37, 0
    %v41 = vadd.f32 %v36, %v39
    %vm42 = vcmask 254976
    %v43 = vsel %vm42, %v41, 0.0
    %44 = vadd.xlane.f32.xlu0 %v43
    %v45 = vpop.xlane.xlu0 %44
    %v46 = vrcp.pop 32.0
    %v47 = vmul.f32 32.0, %v46
    %v48 = vsub.f32 1.0, %v47
    %v49 = vmul.f32 %v46, %v48
    %v50 = vadd.f32 %v46, %v49
    %vm51 = vweird.f32 %v46
    %v52 = vsel %vm51, %v46, %v50
    %v53 = vmul.f32 %v45, %v52
    %v54 = vmul.f32 %v41, %v41
    %v55 = vsel %vm42, %v54, 0.0
    %56 = vadd.xlane.f32.xlu0 %v55
    %v57 = vpop.xlane.xlu0 %56
    %v58 = vmul.f32 %v57, %v52
    %v59 = vmul.f32 %v53, %v53
    %v60 = vsub.f32 %v58, %v59
    %v61 = vsub.f32 %v41, %v53
    %v62 = vadd.f32 %v60, 1e-12
    %v63 = vrsqrt.pop %v62
    %v64 = vmul.f32 %v63, %v62
    %v65 = vmul.f32 %v64, %v63
    %v66 = vmul.f32 0.5, %v65
    %v67 = vsub.f32 1.5, %v66
    %v68 = vmul.f32 %v63, %v67
    %vm69 = vweird.f32 %v62
    %vm70 = vweird.f32 %v63
    %vm71 = vmor %vm69, %vm70
    %v72 = vsel %vm71, %v63, %v68
    %v73 = vmul.f32 %v61, %v72
    %v74 = vld [vmem:[%s3] sm:$0x1]
    %v76 = vperm.slane %v74, 0
    %v78 = vmul.f32 %v73, %v76
    %v79 = vld [vmem:[%s4] sm:$0x1]
    %v81 = vperm.slane %v79, 0
    %v83 = vadd.f32 %v78, %v81
    %v84 = vpack.c.bf16 %v83, %v83
    %v85 = vld [vmem:[%s5] sm:$0xf]
    %v86 = vld [vmem:[%s5 + $0x4] sm:$0xf]
    %v87 = vld [vmem:[%s5 + $0x8] sm:$0xf]
    %v88 = vld [vmem:[%s5 + $0xc] sm:$0xf]
    %v89 = vld [vmem:[%s6] sm:$0x1]
    %v91 = vperm.slane %v89, 0
    %v97 = vunpack.c.l.b16 %v85
    %v98 = vunpack.c.l.b16 %v86
    %v99 = vunpack.c.l.b16 %v87
    %v100 = vunpack.c.l.b16 %v88
    %v101 = vpack.c.b16 %v98, %v97
    %v102 = vpack.c.b16 %v100, %v99
    %vm105 = vcmask 261120
    %v107 = vsel %vm105, %v84, 0
    %109 = vmatpush.bf16.msra.mxu0 0
    %110 = vmatpush.bf16.msra.mxu0 0
    %111 = vmatpush.bf16.msra.mxu0 0
    %112 = vmatpush.bf16.msra.mxu0 0
    %113 = vmatpush.bf16.msra.mxu0 0
    %114 = vmatpush.bf16.msra.mxu0 0
    %115 = vmatpush.bf16.msra.mxu0 %v102
    %116 = vmatpush.bf16.msra.mxu0 %v101
    %117 = vmatmul.bf16.gmra.mxu0 %v107
    %v118 = vpop.f32.mrf.mxu0
    %v119 = vadd.f32 %v91, %v118
    %v120 = vpop.f32.mrf.mxu0
    %121 = vdwg.mxu0
    %v122 = vtanh.pop %v119
    %v123 = vpack.c.bf16 %v122, %v122
    %v124 = vld [vmem:[%s7] sm:$0xf]
    %v125 = vld [vmem:[%s7 + $0x4] sm:$0xf]
    %v126 = vld [vmem:[%s7 + $0x8] sm:$0xf]
    %v127 = vld [vmem:[%s7 + $0xc] sm:$0xf]
    %v128 = vld [vmem:[%s8] sm:$0x1]
    %v130 = vperm.slane %v128, 0
    %v136 = vunpack.c.l.b16 %v124
    %v137 = vunpack.c.l.b16 %v125
    %v138 = vunpack.c.l.b16 %v126
    %v139 = vunpack.c.l.b16 %v127
    %v140 = vpack.c.b16 %v137, %v136
    %v141 = vpack.c.b16 %v139, %v138
    %v145 = vsel %vm105, %v123, 0
    %147 = vmatpush.bf16.msra.mxu0 0
    %148 = vmatpush.bf16.msra.mxu0 0
    %149 = vmatpush.bf16.msra.mxu0 0
    %150 = vmatpush.bf16.msra.mxu0 0
    %151 = vmatpush.bf16.msra.mxu0 0
    %152 = vmatpush.bf16.msra.mxu0 0
    %153 = vmatpush.bf16.msra.mxu0 %v141
    %154 = vmatpush.bf16.msra.mxu0 %v140
    %155 = vmatmul.bf16.gmra.mxu0 %v145
    %v156 = vpop.f32.mrf.mxu0
    %v157 = vadd.f32 %v130, %v156
    %v158 = vpop.f32.mrf.mxu0
    %159 = vdwg.mxu0
    %160 = vst [vmem:[#allocation2] sm:$0x3] %v157
    // Predicated region
    $region38: #{bert_spc_forward.1} parent=1 // pred_check
      _
    $region39: #{bert_spc_forward.1} parent=1 // pred_check_branch
      %162 = sbr.rel (0) target = $region41
    $region40: #{bert_spc_forward.1} parent=1 // pred_region
      %164 = vsyncadd [#allocation3], 0
      %s166 = sshll.u32 [#allocation2], 4
      %s167 = int_to_ptr.vmem [resolvable:$true] %s166
      %s168 = sshll.u32 %s9, 4
      %s169 = int_to_ptr.hbm [resolvable:$true] %s168
      %171 = dma.vmem_to_hbm [thread:$0]  %s167, 32, %s169, [#allocation3]
    $region41: #{bert_spc_forward.1} parent=1 // pred_fallthru
      _
    // Predicated region
    $region42: #{bert_spc_forward.1} parent=1 // pred_check
      _
    $region43: #{bert_spc_forward.1} parent=1 // pred_check_branch
      %173 = sbr.rel (0) target = $region45
    $region44: #{bert_spc_forward.1} parent=1 // pred_region
      %175 = dma.done [#allocation3], 32
    $region45: #{bert_spc_forward.1} parent=1 // pred_fallthru
      _
    %176 = vsyncpa [#allocation3], 1

</llo_original>
